<compile_context>
chip_gen: v5e
topology: v5e:2x2
jax: 0.10.0
libtpu: 0.0.40
codegen_flags: <defaults>
</compile_context>

<pallas_src>
import jax
import jax.numpy as jnp
import numpy as np
from jax.experimental import pallas as pl
from jax.experimental.pallas import tpu as pltpu

KSIZE = 7   # spatial-attention conv kernel size
PAD = 3     # padding = 3 for kernel_size = 7 (matches the PyTorch module)


def cbam_kernel(x_ref, w1_ref, w2_ref, m_ref, o_ref):
    # x_ref : (1, C, HW) VMEM block (one batch element, H*W on the lane axis)
    # w1_ref: (Cr, C) VMEM  == fc1.weight (1x1 conv, squeezed)
    # w2_ref: (C, Cr) VMEM  == fc2.weight (1x1 conv, squeezed)
    # m_ref : (2, HW, HW) VMEM == 7x7 spatial conv folded into dense operators
    x = x_ref[0].astype(jnp.float32)                       # (C, HW)

    w1 = w1_ref[...].astype(jnp.float32)                   # (Cr, C)
    w2 = w2_ref[...].astype(jnp.float32)                   # (C, Cr)

    # ---------------- Channel attention ----------------
    avg_c = jnp.mean(x, axis=1, keepdims=True)             # (C, 1)  AdaptiveAvgPool2d(1)
    max_c = jnp.max(x, axis=1, keepdims=True)              # (C, 1)  AdaptiveMaxPool2d(1)
    pooled = jnp.concatenate([avg_c, max_c], axis=1)       # (C, 2)  both branches at once

    # fc2(relu(fc1(.))) on both pooled vectors with a single matmul pair.
    h = jnp.maximum(
        jnp.dot(w1, pooled, preferred_element_type=jnp.float32), 0.0)   # (Cr, 2)
    l = jnp.dot(w2, h, preferred_element_type=jnp.float32)              # (C, 2)
    logit = jnp.sum(l, axis=1, keepdims=True)                           # (C, 1) avg+max branch
    ca = jax.nn.sigmoid(logit)                                          # (C, 1)

    out1 = x * ca                                           # (C, HW), lane-dense

    # ---------------- Spatial attention ----------------
    avg_s = jnp.mean(out1, axis=0, keepdims=True)           # (1, HW) channel mean
    max_s = jnp.max(out1, axis=0, keepdims=True)            # (1, HW) channel max

    # 7x7 "same" conv (2 in-ch -> 1 out-ch, bias=False) as two MXU matmuls
    # (one per input channel of the conv) -- no lane concat needed.
    sa_logit = (jnp.dot(avg_s, m_ref[0].astype(jnp.float32),
                        preferred_element_type=jnp.float32)
                + jnp.dot(max_s, m_ref[1].astype(jnp.float32),
                          preferred_element_type=jnp.float32))          # (1, HW)
    sa = jax.nn.sigmoid(sa_logit)                            # (1, HW)

    o_ref[0] = (out1 * sa).astype(o_ref.dtype)


def build_spatial_conv_matrices(w_sa, H, W):
    """Fold the 7x7 conv (2->1 ch, pad=3, bias=False) into dense operators.

    Returns M of shape (2, H*W, H*W) with
      M[c, flat(y+dy-3, x+dx-3), flat(y, x)] = w_sa[0, c, dy, dx]
    for all in-bounds taps, so  sa_logit_flat = avg_flat @ M[0] + max_flat @ M[1].
    Pure host-side weight preprocessing (numpy).
    """
    w = np.asarray(w_sa, np.float32).reshape(2, KSIZE, KSIZE)
    HW = H * W
    M = np.zeros((2, HW, HW), np.float32)
    ys, xs = np.meshgrid(np.arange(H), np.arange(W), indexing="ij")
    out_idx = (ys * W + xs).ravel()                          # output pixel p
    for c in range(2):
        for dy in range(KSIZE):
            for dx in range(KSIZE):
                yy = (ys + dy - PAD).ravel()
                xx = (xs + dx - PAD).ravel()
                valid = (yy >= 0) & (yy < H) & (xx >= 0) & (xx < W)
                src = yy * W + xx                            # input pixel q
                np.add.at(M[c], (src[valid], out_idx[valid]), w[c, dy, dx])
    return jnp.asarray(M)


def cbam_pallas(x_nchw, w_fc1, w_fc2, w_sa):
    """x_nchw: (N, C, H, W); w_fc1: (Cr, C); w_fc2: (C, Cr); w_sa: (1, 2, 7, 7)."""
    N, C, H, W = x_nchw.shape
    Cr = w_fc1.shape[0]
    HW = H * W
    x_flat = x_nchw.reshape(N, C, HW)              # lane-dense view (pure reshape)
    m = build_spatial_conv_matrices(w_sa, H, W)    # (2, HW, HW)

    out_flat = pl.pallas_call(
        cbam_kernel,
        out_shape=jax.ShapeDtypeStruct((N, C, HW), x_nchw.dtype),
        grid_spec=pltpu.PrefetchScalarGridSpec(
            num_scalar_prefetch=0,
            grid=(N,),
            in_specs=[
                pl.BlockSpec((1, C, HW), lambda n: (n, 0, 0)),
                pl.BlockSpec((Cr, C), lambda n: (0, 0)),
                pl.BlockSpec((C, Cr), lambda n: (0, 0)),
                pl.BlockSpec((2, HW, HW), lambda n: (0, 0, 0)),
            ],
            out_specs=pl.BlockSpec((1, C, HW), lambda n: (n, 0, 0)),
        ),
        compiler_params=pltpu.CompilerParams(
            dimension_semantics=("parallel",)),
    )(x_flat, w_fc1, w_fc2, m)
    return out_flat.reshape(N, C, H, W)


def cbam_ref(x_nchw, w_fc1, w_fc2, w_sa):
    """Pure-JAX reference with PyTorch (NCHW) conventions."""
    avg = jnp.mean(x_nchw, axis=(2, 3))                      # (N, C)
    mx = jnp.max(x_nchw, axis=(2, 3))                        # (N, C)

    def mlp(v):
        return jax.nn.relu(v @ w_fc1.T) @ w_fc2.T

    ca = jax.nn.sigmoid(mlp(avg) + mlp(mx))                  # (N, C)
    out1 = x_nchw * ca[:, :, None, None]

    avg_s = jnp.mean(out1, axis=1, keepdims=True)
    max_s = jnp.max(out1, axis=1, keepdims=True)
    cat = jnp.concatenate([avg_s, max_s], axis=1)            # (N, 2, H, W)
    sa_logit = jax.lax.conv_general_dilated(
        cat, w_sa, window_strides=(1, 1), padding=((PAD, PAD), (PAD, PAD)),
        dimension_numbers=("NCHW", "OIHW", "NCHW"))
    sa = jax.nn.sigmoid(sa_logit)                            # (N, 1, H, W)
    return out1 * sa


if __name__ == "__main__":
    N, C, H, W = 2, 32, 16, 16
    Cr = C // 16

    key = jax.random.PRNGKey(0)
    k1, k2, k3, k4 = jax.random.split(key, 4)
    x = jax.random.normal(k1, (N, C, H, W), jnp.float32)
    # deterministic synthetic parameters (same shapes as the torch module's convs)
    w_fc1 = jax.random.normal(k2, (Cr, C), jnp.float32) * 0.1   # fc1.weight[:, :, 0, 0]
    w_fc2 = jax.random.normal(k3, (C, Cr), jnp.float32) * 0.1   # fc2.weight[:, :, 0, 0]
    w_sa = jax.random.normal(k4, (1, 2, KSIZE, KSIZE), jnp.float32) * 0.1

    out = cbam_pallas(x, w_fc1, w_fc2, w_sa)
    jax.block_until_ready(out)

    ref = cbam_ref(x, w_fc1, w_fc2, w_sa)
    np.testing.assert_allclose(np.asarray(out), np.asarray(ref),
                               rtol=2e-3, atol=2e-3)
    print("KERNEL_OK")
</pallas_src>

<mosaic_0001>
module attributes {stable_mosaic.version = 11 : i64} {
  func.func @cbam_kernel(%arg0: i32, %arg1: memref<1x32x256xf32, #tpu.memory_space<vmem>>, %arg2: memref<2x32xf32, #tpu.memory_space<vmem>>, %arg3: memref<32x2xf32, #tpu.memory_space<vmem>>, %arg4: memref<2x256x256xf32, #tpu.memory_space<vmem>>, %arg5: memref<1x32x256xf32, #tpu.memory_space<vmem>>) attributes {dimension_semantics = [#tpu.dimension_semantics<parallel>], iteration_bounds = array<i64: 2>, scalar_prefetch = 0 : i64, scratch_operands = 0 : i64, tpu.core_type = #tpu.core_type<tc>, window_params = [{transform_indices = @transform_0, window_bounds = array<i64: 1, 32, 256>}, {pipeline_mode = #tpu.pipeline_mode<synchronous>, transform_indices = @transform_1, window_bounds = array<i64: 2, 32>}, {pipeline_mode = #tpu.pipeline_mode<synchronous>, transform_indices = @transform_2, window_bounds = array<i64: 32, 2>}, {pipeline_mode = #tpu.pipeline_mode<synchronous>, transform_indices = @transform_3, window_bounds = array<i64: 2, 256, 256>}, {transform_indices = @transform_4, window_bounds = array<i64: 1, 32, 256>}]} {
    %c0 = arith.constant 0 : index
    %c0_0 = arith.constant 0 : index
    %c0_1 = arith.constant 0 : index
    %0 = vector.load %arg1[%c0, %c0_0, %c0_1] : memref<1x32x256xf32, #tpu.memory_space<vmem>>, vector<1x32x256xf32>
    %1 = vector.shape_cast %0 : vector<1x32x256xf32> to vector<32x256xf32>
    %c0_2 = arith.constant 0 : index
    %c0_3 = arith.constant 0 : index
    %2 = vector.load %arg2[%c0_2, %c0_3] : memref<2x32xf32, #tpu.memory_space<vmem>>, vector<2x32xf32>
    %c0_4 = arith.constant 0 : index
    %c0_5 = arith.constant 0 : index
    %3 = vector.load %arg3[%c0_4, %c0_5] : memref<32x2xf32, #tpu.memory_space<vmem>>, vector<32x2xf32>
    %cst = arith.constant dense<0.000000e+00> : vector<32xf32>
    %4 = vector.multi_reduction <add>, %1, %cst [1] : vector<32x256xf32> to vector<32xf32>
    %5 = vector.shape_cast %4 : vector<32xf32> to vector<32x1xf32>
    %cst_6 = arith.constant 2.560000e+02 : f32
    %6 = vector.broadcast %cst_6 : f32 to vector<32x1xf32>
    %7 = arith.divf %5, %6 : vector<32x1xf32>
    %cst_7 = arith.constant dense<0xFF800000> : vector<32xf32>
    %8 = vector.multi_reduction <maximumf>, %1, %cst_7 [1] : vector<32x256xf32> to vector<32xf32>
    %9 = vector.shape_cast %8 : vector<32xf32> to vector<32x1xf32>
    %10 = tpu.concatenate %7, %9 in 1 : vector<32x1xf32>, vector<32x1xf32> -> vector<32x2xf32>
    %cst_8 = arith.constant dense<0.000000e+00> : vector<2x2xf32>
    %11 = tpu.matmul %2, %10, %cst_8 {dimension_numbers = #tpu.dot_dimension_numbers<[1], [0], [0], [1], [0, 0, 1, 1], [], []>} : vector<2x32xf32>, vector<32x2xf32>, vector<2x2xf32> -> vector<2x2xf32>
    %cst_9 = arith.constant 0.000000e+00 : f32
    %12 = vector.broadcast %cst_9 : f32 to vector<2x2xf32>
    %13 = arith.maximumf %11, %12 : vector<2x2xf32>
    %cst_10 = arith.constant dense<0.000000e+00> : vector<32x2xf32>
    %14 = tpu.matmul %3, %13, %cst_10 {dimension_numbers = #tpu.dot_dimension_numbers<[1], [0], [0], [1], [0, 0, 1, 1], [], []>} : vector<32x2xf32>, vector<2x2xf32>, vector<32x2xf32> -> vector<32x2xf32>
    %cst_11 = arith.constant dense<0.000000e+00> : vector<32xf32>
    %15 = vector.multi_reduction <add>, %14, %cst_11 [1] : vector<32x2xf32> to vector<32xf32>
    %16 = vector.shape_cast %15 : vector<32xf32> to vector<32x1xf32>
    %17 = arith.negf %16 : vector<32x1xf32>
    %18 = math.exp %17 : vector<32x1xf32>
    %cst_12 = arith.constant 1.000000e+00 : f32
    %19 = vector.broadcast %cst_12 : f32 to vector<32x1xf32>
    %20 = arith.addf %19, %18 : vector<32x1xf32>
    %21 = arith.divf %19, %20 : vector<32x1xf32>
    %22 = vector.broadcast %21 : vector<32x1xf32> to vector<32x256xf32>
    %23 = arith.mulf %1, %22 : vector<32x256xf32>
    %cst_13 = arith.constant dense<0.000000e+00> : vector<256xf32>
    %24 = vector.multi_reduction <add>, %23, %cst_13 [0] : vector<32x256xf32> to vector<256xf32>
    %25 = vector.shape_cast %24 : vector<256xf32> to vector<1x256xf32>
    %cst_14 = arith.constant 3.200000e+01 : f32
    %26 = vector.broadcast %cst_14 : f32 to vector<1x256xf32>
    %27 = arith.divf %25, %26 : vector<1x256xf32>
    %cst_15 = arith.constant dense<0xFF800000> : vector<256xf32>
    %28 = vector.multi_reduction <maximumf>, %23, %cst_15 [0] : vector<32x256xf32> to vector<256xf32>
    %29 = vector.shape_cast %28 : vector<256xf32> to vector<1x256xf32>
    %c0_16 = arith.constant 0 : index
    %c0_17 = arith.constant 0 : index
    %c0_18 = arith.constant 0 : index
    %30 = vector.load %arg4[%c0_16, %c0_17, %c0_18] : memref<2x256x256xf32, #tpu.memory_space<vmem>>, vector<1x256x256xf32>
    %31 = vector.shape_cast %30 : vector<1x256x256xf32> to vector<256x256xf32>
    %cst_19 = arith.constant dense<0.000000e+00> : vector<1x256xf32>
    %32 = tpu.matmul %27, %31, %cst_19 {dimension_numbers = #tpu.dot_dimension_numbers<[1], [0], [0], [1], [0, 0, 1, 1], [], []>} : vector<1x256xf32>, vector<256x256xf32>, vector<1x256xf32> -> vector<1x256xf32>
    %c1 = arith.constant 1 : index
    %c0_20 = arith.constant 0 : index
    %c0_21 = arith.constant 0 : index
    %33 = vector.load %arg4[%c1, %c0_20, %c0_21] : memref<2x256x256xf32, #tpu.memory_space<vmem>>, vector<1x256x256xf32>
    %34 = vector.shape_cast %33 : vector<1x256x256xf32> to vector<256x256xf32>
    %cst_22 = arith.constant dense<0.000000e+00> : vector<1x256xf32>
    %35 = tpu.matmul %29, %34, %cst_22 {dimension_numbers = #tpu.dot_dimension_numbers<[1], [0], [0], [1], [0, 0, 1, 1], [], []>} : vector<1x256xf32>, vector<256x256xf32>, vector<1x256xf32> -> vector<1x256xf32>
    %36 = arith.addf %32, %35 : vector<1x256xf32>
    %37 = arith.negf %36 : vector<1x256xf32>
    %38 = math.exp %37 : vector<1x256xf32>
    %cst_23 = arith.constant 1.000000e+00 : f32
    %39 = vector.broadcast %cst_23 : f32 to vector<1x256xf32>
    %40 = arith.addf %39, %38 : vector<1x256xf32>
    %41 = arith.divf %39, %40 : vector<1x256xf32>
    %42 = vector.broadcast %41 : vector<1x256xf32> to vector<32x256xf32>
    %43 = arith.mulf %23, %42 : vector<32x256xf32>
    %c0_24 = arith.constant 0 : index
    %c0_25 = arith.constant 0 : index
    %c0_26 = arith.constant 0 : index
    %44 = vector.load %arg5[%c0_24, %c0_25, %c0_26] : memref<1x32x256xf32, #tpu.memory_space<vmem>>, vector<1x32x256xf32>
    %45 = vector.shape_cast %44 : vector<1x32x256xf32> to vector<32x256xf32>
    %46 = vector.shape_cast %43 : vector<32x256xf32> to vector<1x32x256xf32>
    tpu.vector_store %arg5[%c0_24, %c0_25, %c0_26], %46 {strides = array<i32>} : memref<1x32x256xf32, #tpu.memory_space<vmem>>, vector<1x32x256xf32>,
    return
  }
  func.func @transform_0(%arg0: i32) -> (i32, i32, i32) {
    %c0_i32 = arith.constant 0 : i32
    %c0_i32_0 = arith.constant 0 : i32
    %c0_i32_1 = arith.constant 0 : i32
    return %arg0, %c0_i32, %c0_i32_0 : i32, i32, i32
  }
  func.func @transform_1(%arg0: i32) -> (i32, i32) {
    %c0_i32 = arith.constant 0 : i32
    %c0_i32_0 = arith.constant 0 : i32
    %c0_i32_1 = arith.constant 0 : i32
    return %c0_i32, %c0_i32_0 : i32, i32
  }
  func.func @transform_2(%arg0: i32) -> (i32, i32) {
    %c0_i32 = arith.constant 0 : i32
    %c0_i32_0 = arith.constant 0 : i32
    %c0_i32_1 = arith.constant 0 : i32
    return %c0_i32, %c0_i32_0 : i32, i32
  }
  func.func @transform_3(%arg0: i32) -> (i32, i32, i32) {
    %c0_i32 = arith.constant 0 : i32
    %c0_i32_0 = arith.constant 0 : i32
    %c0_i32_1 = arith.constant 0 : i32
    %c0_i32_2 = arith.constant 0 : i32
    return %c0_i32, %c0_i32_0, %c0_i32_1 : i32, i32, i32
  }
  func.func @transform_4(%arg0: i32) -> (i32, i32, i32) {
    %c0_i32 = arith.constant 0 : i32
    %c0_i32_0 = arith.constant 0 : i32
    %c0_i32_1 = arith.constant 0 : i32
    return %arg0, %c0_i32, %c0_i32_0 : i32, i32, i32
  }
}

</mosaic_0001>

<llo_original>
// kernel: tpu_custom_call.1
$region0: #{tpu_custom_call.1}
  #allocation0 [shape = 'u32[]', space=smem, size = 0x4, offset = 0x4, fixed_abs, tag = 'smem constant byte address 0x4 - core index']
  #allocation1 [shape = 'u32[72,128]{1,0:T(1,128)}', space=vmem, size = 0x9000, scoped, tag = 'internal scratch']
  %s0 = inlined_call_operand.hbm [shape: f32[2,32,256], index: 0, kind: input, shape index: {}]
  %s1 = inlined_call_operand.vmem [shape: f32[2,32], index: 1, kind: input, shape index: {}]
  %s2 = inlined_call_operand.vmem [shape: f32[32,2], index: 2, kind: input, shape index: {}]
  %s3 = inlined_call_operand.hbm [shape: f32[2,256,256], index: 3, kind: input, shape index: {}]
  %s4 = inlined_call_operand.hbm [shape: f32[2,32,256], index: 4, kind: output, shape index: {}]
  %s5 = sld [smem:[#allocation0]]
  $region57: #{tpu_custom_call.1} parent=0
    _
  %s7 = ssub.s32 1, %s5
  %s8 = scalar_select 0, %s7, %s5
  $region1: #{tpu_custom_call.1} parent=0
    #allocation2 [shape = 'u8[65536]{0}', space=vmem, size = 0x10000, scoped, tag = 'input window, operand 0']
    #allocation3 [shape = 's32[2]{0}', space=sflag, size = 0x8, scoped, tag = 'scoped memory for tpu_custom_call.1']
    #allocation4 [shape = 's32[2]{0}', space=sflag, size = 0x8, scoped, tag = 'scoped memory for tpu_custom_call.1']
    #allocation5 [shape = 'u8[524288]{0}', space=vmem, size = 0x80000, scoped, tag = 'input window, operand 3, single buffered']
    #allocation6 [shape = 's32[1]{0}', space=sflag, size = 0x4, scoped, tag = 'scoped memory for tpu_custom_call.1']
    #allocation7 [shape = 'u8[65536]{0}', space=vmem, size = 0x10000, scoped, tag = 'output window, operand 0']
    %9 = vsyncpa [#allocation3], 0
    %s10 = scalar_lea.sflag [#allocation3], 1
    %11 = vsyncpa %s10, 0
    %12 = vsyncpa [#allocation6], 0
    %13 = vsyncpa [#allocation4], 0
    %s14 = scalar_lea.sflag [#allocation4], 1
    %15 = vsyncpa %s14, 0
    loop: start=0, step=1, limit=4
    $region2: #{tpu_custom_call.1} parent=1 // loop_pre_header
      _
    $region3: #{tpu_custom_call.1} parent=1 // loop_header
      %s17 = sphi 0, %s21
      %p18 = scmp.ge.s32.totalorder %s17, 4
      %s27 = sphi 0, %s29
      %s30 = sphi 0, %s27
      %s31 = sphi 0, %s30
      %s47 = sphi 0, %s31
      %s51 = sphi 0, %s51
      %s53 = sphi 0, %s51
      %s54 = sphi 0, %s53
      %s68 = sphi 0, %s54
      %s72 = sphi 0, %s72
      %s74 = sphi 0, %s72
      %s75 = sphi 0, %s74
      %s89 = sphi 0, %s75
      %s93 = sphi 0, %s93
      %s95 = sphi 0, %s93
      %s96 = sphi 0, %s95
      %s110 = sphi 0, %s96
      %s116 = sphi 0, %s118
      %s119 = sphi 0, %s116
      %s120 = sphi 0, %s119
      %s136 = sphi 0, %s120
    $region4: #{tpu_custom_call.1} parent=1 // loop_header_branch
      %20 = sbr.rel (%p18) target = $region8
    $region5: #{tpu_custom_call.1} parent=1 // loop_body
      %s22 = ssub.s32 %s17, 1
      %s23 = ssub.s32 %s17, 2
      %s24 = sadd.s32 %s17, 1
      %s25 = ssub.s32 %s17, %s24
      %p26 = scmp.eq.s32.totalorder %s25, 0
      %s28 = sadd.s32 %s27, 1
      %s29 = scalar_select %p26, %s27, %s28
      %p32 = pneg %p26
      %p33 = scmp.eq.s32.totalorder %s17, 1
      %p34 = por %p32, %p33
      %p35 = scmp.ne.s32.totalorder %s27, %s30
      %p36 = scmp.eq.s32.totalorder %s17, 0
      %p37 = por %p35, %p36
      %p38 = scmp.ne.s32.totalorder %s27, %s30
      %p39 = scmp.eq.s32.totalorder %s22, 1
      %p40 = por %p38, %p39
      %p41 = scmp.ne.s32.totalorder %s30, %s31
      %p42 = scmp.eq.s32.totalorder %s22, 0
      %p43 = por %p41, %p42
      %p44 = scmp.ne.s32.totalorder %s30, %s31
      %p45 = scmp.eq.s32.totalorder %s23, 1
      %p46 = por %p44, %p45
      %p48 = scmp.ne.s32.totalorder %s31, %s47
      %p49 = scmp.eq.s32.totalorder %s23, 0
      %p50 = por %p48, %p49
      %s52 = sadd.s32 %s51, 1
      %p55 = scmp.eq.s32.totalorder %s17, 1
      %p56 = scmp.ne.s32.totalorder %s51, %s53
      %p57 = scmp.eq.s32.totalorder %s17, 0
      %p58 = por %p56, %p57
      %p59 = scmp.ne.s32.totalorder %s51, %s53
      %p60 = scmp.eq.s32.totalorder %s22, 1
      %p61 = por %p59, %p60
      %p62 = scmp.ne.s32.totalorder %s53, %s54
      %p63 = scmp.eq.s32.totalorder %s22, 0
      %p64 = por %p62, %p63
      %p65 = scmp.ne.s32.totalorder %s53, %s54
      %p66 = scmp.eq.s32.totalorder %s23, 1
      %p67 = por %p65, %p66
      %p69 = scmp.ne.s32.totalorder %s54, %s68
      %p70 = scmp.eq.s32.totalorder %s23, 0
      %p71 = por %p69, %p70
      %s73 = sadd.s32 %s72, 1
      %p76 = scmp.eq.s32.totalorder %s17, 1
      %p77 = scmp.ne.s32.totalorder %s72, %s74
      %p78 = scmp.eq.s32.totalorder %s17, 0
      %p79 = por %p77, %p78
      %p80 = scmp.ne.s32.totalorder %s72, %s74
      %p81 = scmp.eq.s32.totalorder %s22, 1
      %p82 = por %p80, %p81
      %p83 = scmp.ne.s32.totalorder %s74, %s75
      %p84 = scmp.eq.s32.totalorder %s22, 0
      %p85 = por %p83, %p84
      %p86 = scmp.ne.s32.totalorder %s74, %s75
      %p87 = scmp.eq.s32.totalorder %s23, 1
      %p88 = por %p86, %p87
      %p90 = scmp.ne.s32.totalorder %s75, %s89
      %p91 = scmp.eq.s32.totalorder %s23, 0
      %p92 = por %p90, %p91
      %s94 = sadd.s32 %s93, 1
      %p97 = scmp.eq.s32.totalorder %s17, 1
      %p98 = scmp.ne.s32.totalorder %s93, %s95
      %p99 = scmp.eq.s32.totalorder %s17, 0
      %p100 = por %p98, %p99
      %p101 = scmp.ne.s32.totalorder %s93, %s95
      %p102 = scmp.eq.s32.totalorder %s22, 1
      %p103 = por %p101, %p102
      %p104 = scmp.ne.s32.totalorder %s95, %s96
      %p105 = scmp.eq.s32.totalorder %s22, 0
      %p106 = por %p104, %p105
      %p107 = scmp.ne.s32.totalorder %s95, %s96
      %p108 = scmp.eq.s32.totalorder %s23, 1
      %p109 = por %p107, %p108
      %p111 = scmp.ne.s32.totalorder %s96, %s110
      %p112 = scmp.eq.s32.totalorder %s23, 0
      %p113 = por %p111, %p112
      %s114 = ssub.s32 %s17, %s24
      %p115 = scmp.eq.s32.totalorder %s114, 0
      %s117 = sadd.s32 %s116, 1
      %s118 = scalar_select %p115, %s116, %s117
      %p121 = pneg %p115
      %p122 = scmp.eq.s32.totalorder %s17, 1
      %p123 = por %p121, %p122
      %p124 = scmp.ne.s32.totalorder %s116, %s119
      %p125 = scmp.eq.s32.totalorder %s17, 0
      %p126 = por %p124, %p125
      %p127 = scmp.ne.s32.totalorder %s116, %s119
      %p128 = scmp.eq.s32.totalorder %s22, 1
      %p129 = por %p127, %p128
      %p130 = scmp.ne.s32.totalorder %s119, %s120
      %p131 = scmp.eq.s32.totalorder %s22, 0
      %p132 = por %p130, %p131
      %p133 = scmp.ne.s32.totalorder %s119, %s120
      %p134 = scmp.eq.s32.totalorder %s23, 1
      %p135 = por %p133, %p134
      %p137 = scmp.ne.s32.totalorder %s120, %s136
      %p138 = scmp.eq.s32.totalorder %s23, 0
      %p139 = por %p137, %p138
      %p140 = scmp.le.s32.totalorder 1, %s17
      %p141 = scmp.lt.s32.totalorder %s17, 3
      %p142 = pnand %p140, %p141
      %p143 = pneg %p142
      // Predicated region
      $region9: #{tpu_custom_call.1} parent=5 // pred_check
        _
      $region10: #{tpu_custom_call.1} parent=5 // pred_check_branch
        %145 = sbr.rel (%p142) target = $region12
      $region11: #{tpu_custom_call.1} parent=5 // pred_region
        %s146 = ssub.s32 %s17, 1
        // Predicated region
        $region13: #{tpu_custom_call.1} parent=11 // pred_check
          %p147 = pneg %p64
        $region14: #{tpu_custom_call.1} parent=11 // pred_check_branch
          %149 = sbr.rel (%p147) target = $region16
        $region15: #{tpu_custom_call.1} parent=11 // pred_region
          _
        $region16: #{tpu_custom_call.1} parent=11 // pred_fallthru
          _
        // Predicated region
        $region17: #{tpu_custom_call.1} parent=11 // pred_check
          %p150 = pneg %p85
        $region18: #{tpu_custom_call.1} parent=11 // pred_check_branch
          %152 = sbr.rel (%p150) target = $region20
        $region19: #{tpu_custom_call.1} parent=11 // pred_region
          _
        $region20: #{tpu_custom_call.1} parent=11 // pred_fallthru
          _
        // Predicated region
        $region21: #{tpu_custom_call.1} parent=11 // pred_check
          %p153 = pneg %p106
        $region22: #{tpu_custom_call.1} parent=11 // pred_check_branch
          %155 = sbr.rel (%p153) target = $region24
        $region23: #{tpu_custom_call.1} parent=11 // pred_region
          %157 = vsyncadd [#allocation6], 0
          %s158 = sshll.u32 %s3, 4
          %s159 = int_to_ptr.hbm [resolvable:$true] %s158
          %s160 = sshll.u32 [#allocation5], 4
          %s161 = int_to_ptr.vmem [resolvable:$true] %s160
          %166 = dma.hbm_to_vmem [thread:$0]  %s159, 16384, %s161, [#allocation6], 256, 256, 16
        $region24: #{tpu_custom_call.1} parent=11 // pred_fallthru
          _
      $region12: #{tpu_custom_call.1} parent=5 // pred_fallthru
        _
      %p167 = scmp.lt.s32.totalorder %s17, 2
      // Predicated region
      $region25: #{tpu_custom_call.1} parent=5 // pred_check
        %p168 = pneg %p167
      $region26: #{tpu_custom_call.1} parent=5 // pred_check_branch
        %170 = sbr.rel (%p168) target = $region28
      $region27: #{tpu_custom_call.1} parent=5 // pred_region
        // Predicated region
        $region29: #{tpu_custom_call.1} parent=27 // pred_check
          %p171 = pneg %p37
        $region30: #{tpu_custom_call.1} parent=27 // pred_check_branch
          %173 = sbr.rel (%p171) target = $region32
        $region31: #{tpu_custom_call.1} parent=27 // pred_region
          %s174 = sand.u32 %s27, 1
          %s175 = scalar_lea.sflag [#allocation3], %s174
          %s176 = sand.u32 %s27, 1
          %s177 = smul.addr %s176, 64
          %s178 = scalar_lea.vmem [#allocation2], %s177
          %180 = vsyncadd %s175, 0
          %s181 = smul.addr %s17, 8
          %s182 = smul.addr %s181, 8
          %s183 = scalar_lea.hbm %s0, %s182
          %s184 = sshll.u32 %s183, 4
          %s185 = int_to_ptr.hbm [resolvable:$true] %s184
          %s186 = sshll.u32 %s178, 4
          %s187 = int_to_ptr.vmem [resolvable:$true] %s186
          %192 = dma.hbm_to_vmem [thread:$0]  %s185, 1024, %s187, %s175, 256, 256, 16
        $region32: #{tpu_custom_call.1} parent=27 // pred_fallthru
          _
      $region28: #{tpu_custom_call.1} parent=5 // pred_fallthru
        _
      %p193 = scmp.le.s32.totalorder 1, %s17
      %p194 = scmp.lt.s32.totalorder %s17, 3
      %p195 = pnand %p193, %p194
      %p196 = pneg %p195
      // Predicated region
      $region33: #{tpu_custom_call.1} parent=5 // pred_check
        _
      $region34: #{tpu_custom_call.1} parent=5 // pred_check_branch
        %198 = sbr.rel (%p195) target = $region36
      $region35: #{tpu_custom_call.1} parent=5 // pred_region
        %s199 = ssub.s32 %s17, 1
        %s200 = sand.u32 %s30, 1
        %s201 = scalar_lea.sflag [#allocation3], %s200
        %s202 = sand.u32 %s30, 1
        %s203 = smul.addr %s202, 64
        %s204 = scalar_lea.vmem [#allocation2], %s203
        // Predicated region
        $region37: #{tpu_custom_call.1} parent=35 // pred_check
          %p205 = pneg %p43
        $region38: #{tpu_custom_call.1} parent=35 // pred_check_branch
          %207 = sbr.rel (%p205) target = $region40
        $region39: #{tpu_custom_call.1} parent=35 // pred_region
          %209 = dma.done %s201, 1024
        $region40: #{tpu_custom_call.1} parent=35 // pred_fallthru
          _
        // Predicated region
        $region41: #{tpu_custom_call.1} parent=35 // pred_check
          %p210 = pneg %p106
        $region42: #{tpu_custom_call.1} parent=35 // pred_check_branch
          %212 = sbr.rel (%p210) target = $region44
        $region43: #{tpu_custom_call.1} parent=35 // pred_region
          %214 = dma.done [#allocation6], 16384
        $region44: #{tpu_custom_call.1} parent=35 // pred_fallthru
          _
        %s215 = sand.u32 %s30, 1
        %s216 = scalar_lea.sflag [#allocation3], %s215
        %s217 = sand.u32 %s30, 1
        %s218 = smul.addr %s217, 64
        %s219 = scalar_lea.vmem [#allocation2], %s218
        %p220 = pneg %p43
        %p221 = pneg %p40
        %p222 = pneg %p64
        %p223 = pneg %p61
        %p224 = pneg %p85
        %p225 = pneg %p82
        %p226 = pneg %p106
        %p227 = pneg %p103
        %p228 = pneg %p132
        %p229 = pneg %p129
        %s230 = sand.u32 %s119, 1
        %s231 = scalar_lea.sflag [#allocation4], %s230
        %s232 = sand.u32 %s119, 1
        %s233 = smul.addr %s232, 64
        %s234 = scalar_lea.vmem [#allocation7], %s233
        %v235 = vld [vmem:[%s204] sm:$0xff]
        %v236 = vld [vmem:[%s204 + $0x8] sm:$0xff]
        %v237 = vld [vmem:[%s204 + $0x10] sm:$0xff]
        %v238 = vld [vmem:[%s204 + $0x18] sm:$0xff]
        %v239 = vld [vmem:[%s204 + $0x20] sm:$0xff]
        %v240 = vld [vmem:[%s204 + $0x28] sm:$0xff]
        %v241 = vld [vmem:[%s204 + $0x30] sm:$0xff]
        %v242 = vld [vmem:[%s204 + $0x38] sm:$0xff]
        %v243 = vld [vmem:[%s1] sm:$0x3]
        %v244 = vld [vmem:[%s2] sm:$0xff]
        %v245 = vld [vmem:[%s2 + $0x8] sm:$0xff]
        %v246 = vld [vmem:[%s2 + $0x10] sm:$0xff]
        %v247 = vld [vmem:[%s2 + $0x18] sm:$0xff]
        %v248 = vadd.f32 %v235, %v236
        %249 = vadd.xlane.f32.xlu0 %v248
        %v250 = vpop.xlane.xlu0 %249
        %v251 = vadd.f32 %v237, %v238
        %252 = vadd.xlane.f32.xlu0 %v251
        %v253 = vpop.xlane.xlu0 %252
        %v254 = vadd.f32 %v239, %v240
        %255 = vadd.xlane.f32.xlu0 %v254
        %v256 = vpop.xlane.xlu0 %255
        %v257 = vadd.f32 %v241, %v242
        %258 = vadd.xlane.f32.xlu0 %v257
        %v259 = vpop.xlane.xlu0 %258
        %v260 = vrcp.pop 256.0
        %v261 = vmul.f32 256.0, %v260
        %v262 = vsub.f32 1.0, %v261
        %v263 = vmul.f32 %v260, %v262
        %v264 = vadd.f32 %v260, %v263
        %vm265 = vweird.f32 %v260
        %v266 = vsel %vm265, %v260, %v264
        %v267 = vmul.f32 %v250, %v266
        %v268 = vmul.f32 %v253, %v266
        %v269 = vmul.f32 %v256, %v266
        %v270 = vmul.f32 %v259, %v266
        %v271 = vmax.f32 %v235, %v236
        %272 = vmax.xlane.f32.xlu0 %v271
        %v273 = vpop.xlane.xlu0 %272
        %v274 = vmax.f32 %v237, %v238
        %275 = vmax.xlane.f32.xlu0 %v274
        %v276 = vpop.xlane.xlu0 %275
        %v277 = vmax.f32 %v239, %v240
        %278 = vmax.xlane.f32.xlu0 %v277
        %v279 = vpop.xlane.xlu0 %278
        %v280 = vmax.f32 %v241, %v242
        %281 = vmax.xlane.f32.xlu0 %v280
        %v282 = vpop.xlane.xlu0 %281
        %vm283 = vcmask 7168
        %v284 = vsel %vm283, %v267, %v273
        %v285 = vsel %vm283, %v268, %v276
        %v286 = vsel %vm283, %v269, %v279
        %v287 = vsel %vm283, %v270, %v282
        %vm288 = vcmask 261120
        %v290 = vsel %vm288, %v243, 0
        %292 = vmatpush.msra.mxu0 0.0
        %293 = vmatpush.msra.mxu0 0.0
        %294 = vmatpush.msra.mxu0 0.0
        %295 = vmatpush.msra.mxu0 0.0
        %296 = vmatpush.msra.mxu0 0.0
        %297 = vmatpush.msra.mxu0 0.0
        %298 = vmatpush.msra.mxu0 0.0
        %299 = vmatpush.msra.mxu0 0.0
        %300 = vmatpush.msra.mxu0 0.0
        %301 = vmatpush.msra.mxu0 0.0
        %302 = vmatpush.msra.mxu0 0.0
        %303 = vmatpush.msra.mxu0 0.0
        %304 = vmatpush.msra.mxu0 %v287
        %305 = vmatpush.msra.mxu0 %v286
        %306 = vmatpush.msra.mxu0 %v285
        %307 = vmatpush.msra.mxu0 %v284
        %308 = vmatmul.f32.gmra.mxu0 %v290
        %v309 = vpop.f32.mrf.mxu0
        %v310 = vadd.f32 0.0, %v309
        %311 = vdwg.mxu0
        %v312 = vmax.f32 %v310, 0.0
        %vm313 = vcmask 15360
        %v315 = vsel %vm313, %v244, 0
        %v318 = vsel %vm313, %v245, 0
        %v321 = vsel %vm313, %v246, 0
        %v324 = vsel %vm313, %v247, 0
        %vm326 = vcmask 1041408
        %v328 = vsel %vm326, %v312, 0
        %330 = vmatpush.msra.mxu0 0.0
        %331 = vmatpush.msra.mxu0 0.0
        %332 = vmatpush.msra.mxu0 0.0
        %333 = vmatpush.msra.mxu0 0.0
        %334 = vmatpush.msra.mxu0 0.0
        %335 = vmatpush.msra.mxu0 0.0
        %336 = vmatpush.msra.mxu0 0.0
        %337 = vmatpush.msra.mxu0 0.0
        %338 = vmatpush.msra.mxu0 0.0
        %339 = vmatpush.msra.mxu0 0.0
        %340 = vmatpush.msra.mxu0 0.0
        %341 = vmatpush.msra.mxu0 0.0
        %342 = vmatpush.msra.mxu0 0.0
        %343 = vmatpush.msra.mxu0 0.0
        %344 = vmatpush.msra.mxu0 0.0
        %345 = vmatpush.msra.mxu0 %v328
        %346 = vmatmul.f32.gmra.mxu0 %v315
        %v347 = vpop.f32.mrf.mxu0
        %v348 = vadd.f32 0.0, %v347
        %349 = vmatmul.f32.gmra.mxu0 %v318
        %v350 = vpop.f32.mrf.mxu0
        %v351 = vadd.f32 0.0, %v350
        %352 = vmatmul.f32.gmra.mxu0 %v321
        %v353 = vpop.f32.mrf.mxu0
        %v354 = vadd.f32 0.0, %v353
        %355 = vmatmul.f32.gmra.mxu0 %v324
        %v356 = vpop.f32.mrf.mxu0
        %v357 = vadd.f32 0.0, %v356
        %358 = vdwg.mxu0
        %v359 = vsel %vm313, %v348, 0.0
        %360 = vadd.xlane.f32.xlu0 %v359
        %v361 = vpop.xlane.xlu0 %360
        %v362 = vsel %vm313, %v351, 0.0
        %363 = vadd.xlane.f32.xlu0 %v362
        %v364 = vpop.xlane.xlu0 %363
        %v365 = vsel %vm313, %v354, 0.0
        %366 = vadd.xlane.f32.xlu0 %v365
        %v367 = vpop.xlane.xlu0 %366
        %v368 = vsel %vm313, %v357, 0.0
        %369 = vadd.xlane.f32.xlu0 %v368
        %v370 = vpop.xlane.xlu0 %369
        %v371 = vxor.u32 %v361, 2147483648
        %v372 = vxor.u32 %v364, 2147483648
        %v373 = vxor.u32 %v367, 2147483648
        %v374 = vxor.u32 %v370, 2147483648
        %v375 = vmul.f32 %v371, 1.442695
        %v376 = vpow.pop %v375
        %v377 = vmul.f32 %v372, 1.442695
        %v378 = vpow.pop %v377
        %v379 = vmul.f32 %v373, 1.442695
        %v380 = vpow.pop %v379
        %v381 = vmul.f32 %v374, 1.442695
        %v382 = vpow.pop %v381
        %v383 = vadd.f32 %v376, 1.0
        %v384 = vadd.f32 %v378, 1.0
        %v385 = vadd.f32 %v380, 1.0
        %v386 = vadd.f32 %v382, 1.0
        %v387 = vrcp.pop %v383
        %v388 = vmul.f32 %v383, %v387
        %v389 = vsub.f32 1.0, %v388
        %v390 = vmul.f32 %v387, %v389
        %v391 = vadd.f32 %v387, %v390
        %vm392 = vweird.f32 %v383
        %vm393 = vweird.f32 %v387
        %vm394 = vmor %vm392, %vm393
        %v395 = vsel %vm394, %v387, %v391
        %v396 = vand.u32 2147483647, %v383
        %vm397 = vcmp.eq.f32.partialorder %v396, 8.507059e+37
        %v398 = vand.u32 %v383, 2147483648
        %v399 = vor.u32 1.1754944e-38, %v398
        %v400 = vsel %vm397, %v399, %v395
        %v401 = vmul.f32 1.0, %v400
        %v402 = vrcp.pop %v384
        %v403 = vmul.f32 %v384, %v402
        %v404 = vsub.f32 1.0, %v403
        %v405 = vmul.f32 %v402, %v404
        %v406 = vadd.f32 %v402, %v405
        %vm407 = vweird.f32 %v384
        %vm408 = vweird.f32 %v402
        %vm409 = vmor %vm407, %vm408
        %v410 = vsel %vm409, %v402, %v406
        %v411 = vand.u32 2147483647, %v384
        %vm412 = vcmp.eq.f32.partialorder %v411, 8.507059e+37
        %v413 = vand.u32 %v384, 2147483648
        %v414 = vor.u32 1.1754944e-38, %v413
        %v415 = vsel %vm412, %v414, %v410
        %v416 = vmul.f32 1.0, %v415
        %v417 = vrcp.pop %v385
        %v418 = vmul.f32 %v385, %v417
        %v419 = vsub.f32 1.0, %v418
        %v420 = vmul.f32 %v417, %v419
        %v421 = vadd.f32 %v417, %v420
        %vm422 = vweird.f32 %v385
        %vm423 = vweird.f32 %v417
        %vm424 = vmor %vm422, %vm423
        %v425 = vsel %vm424, %v417, %v421
        %v426 = vand.u32 2147483647, %v385
        %vm427 = vcmp.eq.f32.partialorder %v426, 8.507059e+37
        %v428 = vand.u32 %v385, 2147483648
        %v429 = vor.u32 1.1754944e-38, %v428
        %v430 = vsel %vm427, %v429, %v425
        %v431 = vmul.f32 1.0, %v430
        %v432 = vrcp.pop %v386
        %v433 = vmul.f32 %v386, %v432
        %v434 = vsub.f32 1.0, %v433
        %v435 = vmul.f32 %v432, %v434
        %v436 = vadd.f32 %v432, %v435
        %vm437 = vweird.f32 %v386
        %vm438 = vweird.f32 %v432
        %vm439 = vmor %vm437, %vm438
        %v440 = vsel %vm439, %v432, %v436
        %v441 = vand.u32 2147483647, %v386
        %vm442 = vcmp.eq.f32.partialorder %v441, 8.507059e+37
        %v443 = vand.u32 %v386, 2147483648
        %v444 = vor.u32 1.1754944e-38, %v443
        %v445 = vsel %vm442, %v444, %v440
        %v446 = vmul.f32 1.0, %v445
        %v447 = vmul.f32 %v235, %v401
        %v448 = vmul.f32 %v236, %v401
        %v449 = vmul.f32 %v237, %v416
        %v450 = vmul.f32 %v238, %v416
        %v451 = vmul.f32 %v239, %v431
        %v452 = vmul.f32 %v240, %v431
        %v453 = vmul.f32 %v241, %v446
        %v454 = vmul.f32 %v242, %v446
        %v455 = vadd.f32 %v447, %v449
        %v456 = vadd.f32 %v455, %v451
        %v457 = vadd.f32 %v456, %v453
        %v458 = vrot.slane %v457, 4
        %v459 = vadd.f32 %v457, %v458
        %v460 = vrot.slane %v459, 2
        %v461 = vadd.f32 %v459, %v460
        %v462 = vrot.slane %v461, 1
        %v463 = vadd.f32 %v461, %v462
        %v464 = vadd.f32 %v448, %v450
        %v465 = vadd.f32 %v464, %v452
        %v466 = vadd.f32 %v465, %v454
        %v467 = vrot.slane %v466, 4
        %v468 = vadd.f32 %v466, %v467
        %v469 = vrot.slane %v468, 2
        %v470 = vadd.f32 %v468, %v469
        %v471 = vrot.slane %v470, 1
        %v472 = vadd.f32 %v470, %v471
        %v473 = vrcp.pop 32.0
        %v474 = vmul.f32 32.0, %v473
        %v475 = vsub.f32 1.0, %v474
        %v476 = vmul.f32 %v473, %v475
        %v477 = vadd.f32 %v473, %v476
        %vm478 = vweird.f32 %v473
        %v479 = vsel %vm478, %v473, %v477
        %v480 = vmul.f32 %v463, %v479
        %v481 = vmul.f32 %v472, %v479
        %v482 = vmax.f32 %v447, %v451
        %v483 = vmax.f32 %v449, %v453
        %v484 = vmax.f32 %v482, %v483
        %v485 = vrot.slane %v484, 4
        %v486 = vmax.f32 %v484, %v485
        %v487 = vrot.slane %v486, 2
        %v488 = vmax.f32 %v486, %v487
        %v489 = vrot.slane %v488, 1
        %v490 = vmax.f32 %v488, %v489
        %v491 = vmax.f32 %v448, %v452
        %v492 = vmax.f32 %v450, %v454
        %v493 = vmax.f32 %v491, %v492
        %v494 = vrot.slane %v493, 4
        %v495 = vmax.f32 %v493, %v494
        %v496 = vrot.slane %v495, 2
        %v497 = vmax.f32 %v495, %v496
        %v498 = vrot.slane %v497, 1
        %v499 = vmax.f32 %v497, %v498
        %v500 = vld [vmem:[#allocation5] sm:$0xff]
        %v501 = vld [vmem:[#allocation5 + $0x8] sm:$0xff]
        %v502 = vld [vmem:[#allocation5 + $0x10] sm:$0xff]
        %v503 = vld [vmem:[#allocation5 + $0x18] sm:$0xff]
        %v504 = vld [vmem:[#allocation5 + $0x20] sm:$0xff]
        %v505 = vld [vmem:[#allocation5 + $0x28] sm:$0xff]
        %v506 = vld [vmem:[#allocation5 + $0x30] sm:$0xff]
        %v507 = vld [vmem:[#allocation5 + $0x38] sm:$0xff]
        %v508 = vld [vmem:[#allocation5 + $0x40] sm:$0xff]
        %v509 = vld [vmem:[#allocation5 + $0x48] sm:$0xff]
        %v510 = vld [vmem:[#allocation5 + $0x50] sm:$0xff]
        %v511 = vld [vmem:[#allocation5 + $0x58] sm:$0xff]
        %v512 = vld [vmem:[#allocation5 + $0x60] sm:$0xff]
        %v513 = vld [vmem:[#allocation5 + $0x68] sm:$0xff]
        %v514 = vld [vmem:[#allocation5 + $0x70] sm:$0xff]
        %v515 = vld [vmem:[#allocation5 + $0x78] sm:$0xff]
        %v516 = vld [vmem:[#allocation5 + $0x80] sm:$0xff]
        %v517 = vld [vmem:[#allocation5 + $0x88] sm:$0xff]
        %v518 = vld [vmem:[#allocation5 + $0x90] sm:$0xff]
        %v519 = vld [vmem:[#allocation5 + $0x98] sm:$0xff]
        %v520 = vld [vmem:[#allocation5 + $0xa0] sm:$0xff]
        %v521 = vld [vmem:[#allocation5 + $0xa8] sm:$0xff]
        %v522 = vld [vmem:[#allocation5 + $0xb0] sm:$0xff]
        %v523 = vld [vmem:[#allocation5 + $0xb8] sm:$0xff]
        %v524 = vld [vmem:[#allocation5 + $0xc0] sm:$0xff]
        %v525 = vld [vmem:[#allocation5 + $0xc8] sm:$0xff]
        %v526 = vld [vmem:[#allocation5 + $0xd0] sm:$0xff]
        %v527 = vld [vmem:[#allocation5 + $0xd8] sm:$0xff]
        %v528 = vld [vmem:[#allocation5 + $0xe0] sm:$0xff]
        %v529 = vld [vmem:[#allocation5 + $0xe8] sm:$0xff]
        %v530 = vld [vmem:[#allocation5 + $0xf0] sm:$0xff]
        %v531 = vld [vmem:[#allocation5 + $0xf8] sm:$0xff]
        %v532 = vld [vmem:[#allocation5 + $0x100] sm:$0xff]
        %v533 = vld [vmem:[#allocation5 + $0x108] sm:$0xff]
        %v534 = vld [vmem:[#allocation5 + $0x110] sm:$0xff]
        %v535 = vld [vmem:[#allocation5 + $0x118] sm:$0xff]
        %v536 = vld [vmem:[#allocation5 + $0x120] sm:$0xff]
        %v537 = vld [vmem:[#allocation5 + $0x128] sm:$0xff]
        %v538 = vld [vmem:[#allocation5 + $0x130] sm:$0xff]
        %v539 = vld [vmem:[#allocation5 + $0x138] sm:$0xff]
        %v540 = vld [vmem:[#allocation5 + $0x140] sm:$0xff]
        %v541 = vld [vmem:[#allocation5 + $0x148] sm:$0xff]
        %v542 = vld [vmem:[#allocation5 + $0x150] sm:$0xff]
        %v543 = vld [vmem:[#allocation5 + $0x158] sm:$0xff]
        %v544 = vld [vmem:[#allocation5 + $0x160] sm:$0xff]
        %v545 = vld [vmem:[#allocation5 + $0x168] sm:$0xff]
        %v546 = vld [vmem:[#allocation5 + $0x170] sm:$0xff]
        %v547 = vld [vmem:[#allocation5 + $0x178] sm:$0xff]
        %v548 = vld [vmem:[#allocation5 + $0x180] sm:$0xff]
        %v549 = vld [vmem:[#allocation5 + $0x188] sm:$0xff]
        %v550 = vld [vmem:[#allocation5 + $0x190] sm:$0xff]
        %v551 = vld [vmem:[#allocation5 + $0x198] sm:$0xff]
        %v552 = vld [vmem:[#allocation5 + $0x1a0] sm:$0xff]
        %v553 = vld [vmem:[#allocation5 + $0x1a8] sm:$0xff]
        %v554 = vld [vmem:[#allocation5 + $0x1b0] sm:$0xff]
        %v555 = vld [vmem:[#allocation5 + $0x1b8] sm:$0xff]
        %v556 = vld [vmem:[#allocation5 + $0x1c0] sm:$0xff]
        %v557 = vld [vmem:[#allocation5 + $0x1c8] sm:$0xff]
        %v558 = vld [vmem:[#allocation5 + $0x1d0] sm:$0xff]
        %v559 = vld [vmem:[#allocation5 + $0x1d8] sm:$0xff]
        %v560 = vld [vmem:[#allocation5 + $0x1e0] sm:$0xff]
        %v561 = vld [vmem:[#allocation5 + $0x1e8] sm:$0xff]
        %v562 = vld [vmem:[#allocation5 + $0x1f0] sm:$0xff]
        %v563 = vld [vmem:[#allocation5 + $0x1f8] sm:$0xff]
        %s564 = scalar_lea.vmem [#allocation5], 512
        %v565 = vld [vmem:[%s564] sm:$0xff]
        %v566 = vld [vmem:[%s564 + $0x8] sm:$0xff]
        %v567 = vld [vmem:[%s564 + $0x10] sm:$0xff]
        %v568 = vld [vmem:[%s564 + $0x18] sm:$0xff]
        %v569 = vld [vmem:[%s564 + $0x20] sm:$0xff]
        %v570 = vld [vmem:[%s564 + $0x28] sm:$0xff]
        %v571 = vld [vmem:[%s564 + $0x30] sm:$0xff]
        %v572 = vld [vmem:[%s564 + $0x38] sm:$0xff]
        %v573 = vld [vmem:[%s564 + $0x40] sm:$0xff]
        %v574 = vld [vmem:[%s564 + $0x48] sm:$0xff]
        %v575 = vld [vmem:[%s564 + $0x50] sm:$0xff]
        %v576 = vld [vmem:[%s564 + $0x58] sm:$0xff]
        %v577 = vld [vmem:[%s564 + $0x60] sm:$0xff]
        %v578 = vld [vmem:[%s564 + $0x68] sm:$0xff]
        %v579 = vld [vmem:[%s564 + $0x70] sm:$0xff]
        %v580 = vld [vmem:[%s564 + $0x78] sm:$0xff]
        %v581 = vld [vmem:[%s564 + $0x80] sm:$0xff]
        %v582 = vld [vmem:[%s564 + $0x88] sm:$0xff]
        %v583 = vld [vmem:[%s564 + $0x90] sm:$0xff]
        %v584 = vld [vmem:[%s564 + $0x98] sm:$0xff]
        %v585 = vld [vmem:[%s564 + $0xa0] sm:$0xff]
        %v586 = vld [vmem:[%s564 + $0xa8] sm:$0xff]
        %v587 = vld [vmem:[%s564 + $0xb0] sm:$0xff]
        %v588 = vld [vmem:[%s564 + $0xb8] sm:$0xff]
        %v589 = vld [vmem:[%s564 + $0xc0] sm:$0xff]
        %v590 = vld [vmem:[%s564 + $0xc8] sm:$0xff]
        %v591 = vld [vmem:[%s564 + $0xd0] sm:$0xff]
        %v592 = vld [vmem:[%s564 + $0xd8] sm:$0xff]
        %v593 = vld [vmem:[%s564 + $0xe0] sm:$0xff]
        %v594 = vld [vmem:[%s564 + $0xe8] sm:$0xff]
        %v595 = vld [vmem:[%s564 + $0xf0] sm:$0xff]
        %v596 = vld [vmem:[%s564 + $0xf8] sm:$0xff]
        %v597 = vld [vmem:[%s564 + $0x100] sm:$0xff]
        %v598 = vld [vmem:[%s564 + $0x108] sm:$0xff]
        %v599 = vld [vmem:[%s564 + $0x110] sm:$0xff]
        %v600 = vld [vmem:[%s564 + $0x118] sm:$0xff]
        %v601 = vld [vmem:[%s564 + $0x120] sm:$0xff]
        %v602 = vld [vmem:[%s564 + $0x128] sm:$0xff]
        %v603 = vld [vmem:[%s564 + $0x130] sm:$0xff]
        %v604 = vld [vmem:[%s564 + $0x138] sm:$0xff]
        %v605 = vld [vmem:[%s564 + $0x140] sm:$0xff]
        %v606 = vld [vmem:[%s564 + $0x148] sm:$0xff]
        %v607 = vld [vmem:[%s564 + $0x150] sm:$0xff]
        %v608 = vld [vmem:[%s564 + $0x158] sm:$0xff]
        %v609 = vld [vmem:[%s564 + $0x160] sm:$0xff]
        %v610 = vld [vmem:[%s564 + $0x168] sm:$0xff]
        %v611 = vld [vmem:[%s564 + $0x170] sm:$0xff]
        %v612 = vld [vmem:[%s564 + $0x178] sm:$0xff]
        %v613 = vld [vmem:[%s564 + $0x180] sm:$0xff]
        %v614 = vld [vmem:[%s564 + $0x188] sm:$0xff]
        %v615 = vld [vmem:[%s564 + $0x190] sm:$0xff]
        %v616 = vld [vmem:[%s564 + $0x198] sm:$0xff]
        %v617 = vld [vmem:[%s564 + $0x1a0] sm:$0xff]
        %v618 = vld [vmem:[%s564 + $0x1a8] sm:$0xff]
        %v619 = vld [vmem:[%s564 + $0x1b0] sm:$0xff]
        %v620 = vld [vmem:[%s564 + $0x1b8] sm:$0xff]
        %v621 = vld [vmem:[%s564 + $0x1c0] sm:$0xff]
        %v622 = vld [vmem:[%s564 + $0x1c8] sm:$0xff]
        %v623 = vld [vmem:[%s564 + $0x1d0] sm:$0xff]
        %v624 = vld [vmem:[%s564 + $0x1d8] sm:$0xff]
        %v625 = vld [vmem:[%s564 + $0x1e0] sm:$0xff]
        %v626 = vld [vmem:[%s564 + $0x1e8] sm:$0xff]
        %v627 = vld [vmem:[%s564 + $0x1f0] sm:$0xff]
        %v628 = vld [vmem:[%s564 + $0x1f8] sm:$0xff]
        %629 = vmatpush.msra.mxu0 %v595
        %630 = vmatpush.msra.mxu0 %v593
        %631 = vmatpush.msra.mxu0 %v591
        %632 = vmatpush.msra.mxu0 %v589
        %633 = vmatpush.msra.mxu0 %v587
        %634 = vmatpush.msra.mxu0 %v585
        %635 = vmatpush.msra.mxu0 %v583
        %636 = vmatpush.msra.mxu0 %v581
        %637 = vmatpush.msra.mxu0 %v579
        %638 = vmatpush.msra.mxu0 %v577
        %639 = vmatpush.msra.mxu0 %v575
        %640 = vmatpush.msra.mxu0 %v573
        %641 = vmatpush.msra.mxu0 %v571
        %642 = vmatpush.msra.mxu0 %v569
        %643 = vmatpush.msra.mxu0 %v567
        %644 = vmatpush.msra.mxu0 %v565
        %645 = vmatmul.f32.gmra.mxu0 %v490
        %v646 = vpop.f32.mrf.mxu0
        %v647 = vadd.f32 0.0, %v646
        %648 = vdwg.mxu0
        %649 = vmatpush.msra.mxu0 %v627
        %650 = vmatpush.msra.mxu0 %v625
        %651 = vmatpush.msra.mxu0 %v623
        %652 = vmatpush.msra.mxu0 %v621
        %653 = vmatpush.msra.mxu0 %v619
        %654 = vmatpush.msra.mxu0 %v617
        %655 = vmatpush.msra.mxu0 %v615
        %656 = vmatpush.msra.mxu0 %v613
        %657 = vmatpush.msra.mxu0 %v611
        %658 = vmatpush.msra.mxu0 %v609
        %659 = vmatpush.msra.mxu0 %v607
        %660 = vmatpush.msra.mxu0 %v605
        %661 = vmatpush.msra.mxu0 %v603
        %662 = vmatpush.msra.mxu0 %v601
        %663 = vmatpush.msra.mxu0 %v599
        %664 = vmatpush.msra.mxu0 %v597
        %665 = vmatmul.f32.gmra.mxu0 %v499
        %v666 = vpop.f32.mrf.mxu0
        %v667 = vadd.f32 %v647, %v666
        %668 = vdwg.mxu0
        %669 = vmatpush.msra.mxu0 %v596
        %670 = vmatpush.msra.mxu0 %v594
        %671 = vmatpush.msra.mxu0 %v592
        %672 = vmatpush.msra.mxu0 %v590
        %673 = vmatpush.msra.mxu0 %v588
        %674 = vmatpush.msra.mxu0 %v586
        %675 = vmatpush.msra.mxu0 %v584
        %676 = vmatpush.msra.mxu0 %v582
        %677 = vmatpush.msra.mxu0 %v580
        %678 = vmatpush.msra.mxu0 %v578
        %679 = vmatpush.msra.mxu0 %v576
        %680 = vmatpush.msra.mxu0 %v574
        %681 = vmatpush.msra.mxu0 %v572
        %682 = vmatpush.msra.mxu0 %v570
        %683 = vmatpush.msra.mxu0 %v568
        %684 = vmatpush.msra.mxu0 %v566
        %685 = vmatmul.f32.gmra.mxu0 %v490
        %v686 = vpop.f32.mrf.mxu0
        %v687 = vadd.f32 0.0, %v686
        %688 = vdwg.mxu0
        %689 = vmatpush.msra.mxu0 %v628
        %690 = vmatpush.msra.mxu0 %v626
        %691 = vmatpush.msra.mxu0 %v624
        %692 = vmatpush.msra.mxu0 %v622
        %693 = vmatpush.msra.mxu0 %v620
        %694 = vmatpush.msra.mxu0 %v618
        %695 = vmatpush.msra.mxu0 %v616
        %696 = vmatpush.msra.mxu0 %v614
        %697 = vmatpush.msra.mxu0 %v612
        %698 = vmatpush.msra.mxu0 %v610
        %699 = vmatpush.msra.mxu0 %v608
        %700 = vmatpush.msra.mxu0 %v606
        %701 = vmatpush.msra.mxu0 %v604
        %702 = vmatpush.msra.mxu0 %v602
        %703 = vmatpush.msra.mxu0 %v600
        %704 = vmatpush.msra.mxu0 %v598
        %705 = vmatmul.f32.gmra.mxu0 %v499
        %v706 = vpop.f32.mrf.mxu0
        %v707 = vadd.f32 %v687, %v706
        %708 = vdwg.mxu0
        %709 = vmatpush.msra.mxu0 %v530
        %710 = vmatpush.msra.mxu0 %v528
        %711 = vmatpush.msra.mxu0 %v526
        %712 = vmatpush.msra.mxu0 %v524
        %713 = vmatpush.msra.mxu0 %v522
        %714 = vmatpush.msra.mxu0 %v520
        %715 = vmatpush.msra.mxu0 %v518
        %716 = vmatpush.msra.mxu0 %v516
        %717 = vmatpush.msra.mxu0 %v514
        %718 = vmatpush.msra.mxu0 %v512
        %719 = vmatpush.msra.mxu0 %v510
        %720 = vmatpush.msra.mxu0 %v508
        %721 = vmatpush.msra.mxu0 %v506
        %722 = vmatpush.msra.mxu0 %v504
        %723 = vmatpush.msra.mxu0 %v502
        %724 = vmatpush.msra.mxu0 %v500
        %725 = vmatmul.f32.gmra.mxu0 %v480
        %v726 = vpop.f32.mrf.mxu0
        %v727 = vadd.f32 %v667, %v726
        %728 = vdwg.mxu0
        %729 = vmatpush.msra.mxu0 %v562
        %730 = vmatpush.msra.mxu0 %v560
        %731 = vmatpush.msra.mxu0 %v558
        %732 = vmatpush.msra.mxu0 %v556
        %733 = vmatpush.msra.mxu0 %v554
        %734 = vmatpush.msra.mxu0 %v552
        %735 = vmatpush.msra.mxu0 %v550
        %736 = vmatpush.msra.mxu0 %v548
        %737 = vmatpush.msra.mxu0 %v546
        %738 = vmatpush.msra.mxu0 %v544
        %739 = vmatpush.msra.mxu0 %v542
        %740 = vmatpush.msra.mxu0 %v540
        %741 = vmatpush.msra.mxu0 %v538
        %742 = vmatpush.msra.mxu0 %v536
        %743 = vmatpush.msra.mxu0 %v534
        %744 = vmatpush.msra.mxu0 %v532
        %745 = vmatmul.f32.gmra.mxu0 %v481
        %v746 = vpop.f32.mrf.mxu0
        %v747 = vadd.f32 %v727, %v746
        %748 = vdwg.mxu0
        %749 = vmatpush.msra.mxu0 %v531
        %750 = vmatpush.msra.mxu0 %v529
        %751 = vmatpush.msra.mxu0 %v527
        %752 = vmatpush.msra.mxu0 %v525
        %753 = vmatpush.msra.mxu0 %v523
        %754 = vmatpush.msra.mxu0 %v521
        %755 = vmatpush.msra.mxu0 %v519
        %756 = vmatpush.msra.mxu0 %v517
        %757 = vmatpush.msra.mxu0 %v515
        %758 = vmatpush.msra.mxu0 %v513
        %759 = vmatpush.msra.mxu0 %v511
        %760 = vmatpush.msra.mxu0 %v509
        %761 = vmatpush.msra.mxu0 %v507
        %762 = vmatpush.msra.mxu0 %v505
        %763 = vmatpush.msra.mxu0 %v503
        %764 = vmatpush.msra.mxu0 %v501
        %765 = vmatmul.f32.gmra.mxu0 %v480
        %v766 = vpop.f32.mrf.mxu0
        %v767 = vadd.f32 %v707, %v766
        %768 = vdwg.mxu0
        %769 = vmatpush.msra.mxu0 %v563
        %770 = vmatpush.msra.mxu0 %v561
        %771 = vmatpush.msra.mxu0 %v559
        %772 = vmatpush.msra.mxu0 %v557
        %773 = vmatpush.msra.mxu0 %v555
        %774 = vmatpush.msra.mxu0 %v553
        %775 = vmatpush.msra.mxu0 %v551
        %776 = vmatpush.msra.mxu0 %v549
        %777 = vmatpush.msra.mxu0 %v547
        %778 = vmatpush.msra.mxu0 %v545
        %779 = vmatpush.msra.mxu0 %v543
        %780 = vmatpush.msra.mxu0 %v541
        %781 = vmatpush.msra.mxu0 %v539
        %782 = vmatpush.msra.mxu0 %v537
        %783 = vmatpush.msra.mxu0 %v535
        %784 = vmatpush.msra.mxu0 %v533
        %785 = vmatmul.f32.gmra.mxu0 %v481
        %v786 = vpop.f32.mrf.mxu0
        %v787 = vadd.f32 %v767, %v786
        %788 = vdwg.mxu0
        %v789 = vxor.u32 %v747, 2147483648
        %v790 = vxor.u32 %v787, 2147483648
        %v791 = vmul.f32 %v789, 1.442695
        %v792 = vpow.pop %v791
        %v793 = vmul.f32 %v790, 1.442695
        %v794 = vpow.pop %v793
        %v795 = vadd.f32 %v792, 1.0
        %v796 = vadd.f32 %v794, 1.0
        %v797 = vrcp.pop %v795
        %v798 = vmul.f32 %v795, %v797
        %v799 = vsub.f32 1.0, %v798
        %v800 = vmul.f32 %v797, %v799
        %v801 = vadd.f32 %v797, %v800
        %vm802 = vweird.f32 %v795
        %vm803 = vweird.f32 %v797
        %vm804 = vmor %vm802, %vm803
        %v805 = vsel %vm804, %v797, %v801
        %v806 = vand.u32 2147483647, %v795
        %vm807 = vcmp.eq.f32.partialorder %v806, 8.507059e+37
        %v808 = vand.u32 %v795, 2147483648
        %v809 = vor.u32 1.1754944e-38, %v808
        %v810 = vsel %vm807, %v809, %v805
        %v811 = vmul.f32 1.0, %v810
        %v812 = vrcp.pop %v796
        %v813 = vmul.f32 %v796, %v812
        %v814 = vsub.f32 1.0, %v813
        %v815 = vmul.f32 %v812, %v814
        %v816 = vadd.f32 %v812, %v815
        %vm817 = vweird.f32 %v796
        %vm818 = vweird.f32 %v812
        %vm819 = vmor %vm817, %vm818
        %v820 = vsel %vm819, %v812, %v816
        %v821 = vand.u32 2147483647, %v796
        %vm822 = vcmp.eq.f32.partialorder %v821, 8.507059e+37
        %v823 = vand.u32 %v796, 2147483648
        %v824 = vor.u32 1.1754944e-38, %v823
        %v825 = vsel %vm822, %v824, %v820
        %v826 = vmul.f32 1.0, %v825
        %v827 = vperm.slane %v811, 0
        %v828 = vperm.slane %v826, 0
        %v829 = vmul.f32 %v447, %v827
        %v830 = vmul.f32 %v448, %v828
        %v831 = vmul.f32 %v449, %v827
        %v832 = vmul.f32 %v450, %v828
        %v833 = vmul.f32 %v451, %v827
        %v834 = vmul.f32 %v452, %v828
        %v835 = vmul.f32 %v453, %v827
        %v836 = vmul.f32 %v454, %v828
        %837 = vst [vmem:[%s234] sm:$0xff] %v829
        %838 = vst [vmem:[%s234 + $0x8] sm:$0xff] %v830
        %839 = vst [vmem:[%s234 + $0x10] sm:$0xff] %v831
        %840 = vst [vmem:[%s234 + $0x18] sm:$0xff] %v832
        %841 = vst [vmem:[%s234 + $0x20] sm:$0xff] %v833
        %842 = vst [vmem:[%s234 + $0x28] sm:$0xff] %v834
        %843 = vst [vmem:[%s234 + $0x30] sm:$0xff] %v835
        %844 = vst [vmem:[%s234 + $0x38] sm:$0xff] %v836
        %s845 = sand.u32 %s119, 1
        %s846 = scalar_lea.sflag [#allocation4], %s845
        %s847 = sand.u32 %s119, 1
        %s848 = smul.addr %s847, 64
        %s849 = scalar_lea.vmem [#allocation7], %s848
        // Predicated region
        $region45: #{tpu_custom_call.1} parent=35 // pred_check
          %p850 = pneg %p129
        $region46: #{tpu_custom_call.1} parent=35 // pred_check_branch
          %852 = sbr.rel (%p850) target = $region48
        $region47: #{tpu_custom_call.1} parent=35 // pred_region
          %854 = vsyncadd %s846, 0
          %s855 = smul.addr %s22, 8
          %s856 = smul.addr %s855, 8
          %s857 = scalar_lea.hbm %s4, %s856
          %s858 = sshll.u32 %s849, 4
          %s859 = int_to_ptr.vmem [resolvable:$true] %s858
          %s860 = sshll.u32 %s857, 4
          %s861 = int_to_ptr.hbm [resolvable:$true] %s860
          %866 = dma.vmem_to_hbm [thread:$0]  %s859, 1024, %s861, %s846, 256, 256, 16
        $region48: #{tpu_custom_call.1} parent=35 // pred_fallthru
          _
      $region36: #{tpu_custom_call.1} parent=5 // pred_fallthru
        _
      %p867 = scmp.le.s32.totalorder 2, %s17
      // Predicated region
      $region49: #{tpu_custom_call.1} parent=5 // pred_check
        %p868 = pneg %p867
      $region50: #{tpu_custom_call.1} parent=5 // pred_check_branch
        %870 = sbr.rel (%p868) target = $region52
      $region51: #{tpu_custom_call.1} parent=5 // pred_region
        %s871 = ssub.s32 %s17, 2
        // Predicated region
        $region53: #{tpu_custom_call.1} parent=51 // pred_check
          %p872 = pneg %p135
        $region54: #{tpu_custom_call.1} parent=51 // pred_check_branch
          %874 = sbr.rel (%p872) target = $region56
        $region55: #{tpu_custom_call.1} parent=51 // pred_region
          %s875 = sand.u32 %s120, 1
          %s876 = scalar_lea.sflag [#allocation4], %s875
          %s877 = sand.u32 %s120, 1
          %s878 = smul.addr %s877, 64
          %s879 = scalar_lea.vmem [#allocation7], %s878
          %881 = dma.done %s876, 1024
        $region56: #{tpu_custom_call.1} parent=51 // pred_fallthru
          _
      $region52: #{tpu_custom_call.1} parent=5 // pred_fallthru
        _
    $region6: #{tpu_custom_call.1} parent=1 // loop_footer
      %s21 = sadd.s32 1, %s17
    $region7: #{tpu_custom_call.1} parent=1 // loop_footer_branch
      %16 = sbr.rel target = $region3
    $region8: #{tpu_custom_call.1} parent=1 // loop_exit
      _
    %882 = vsyncpa [#allocation3], 1
    %s883 = scalar_lea.sflag [#allocation3], 1
    %884 = vsyncpa %s883, 1
    %885 = vsyncpa [#allocation6], 1
    %886 = vsyncpa [#allocation4], 1
    %s887 = scalar_lea.sflag [#allocation4], 1
    %888 = vsyncpa %s887, 1

</llo_original>
